<compile_context>
chip_gen: v6e
topology: v6e:2x2x1
jax: 0.10.0
libtpu: 0.0.40
codegen_flags: <defaults>
</compile_context>

<pallas_src>
import functools

import jax
import jax.numpy as jnp
from jax.experimental import pallas as pl
from jax.experimental.pallas import tpu as pltpu


def _round_up(x, m):
    return (x + m - 1) // m * m


def _bert_embeddings_kernel(ids_ref, word_hbm, tts_ref, pos_ref, type_ref,
                            gamma_ref, beta_ref, o_ref, w_buf, w_sem, *, eps):
    """Args (per grid step):
      ids_ref  : SMEM int32 [B*S_pad]   (scalar-prefetched flattened input_ids)
      word_hbm : HBM  [V, H]            (pl.ANY — gathered manually)
      tts_ref  : VMEM (1, TOK, 1) int32 (token-type ids of this tile)
      pos_ref  : VMEM (TOK, H)          (position rows of this tile)
      type_ref : VMEM (T, H)            (resident token-type table)
      gamma/beta: VMEM (1, H)           (resident LayerNorm params)
      o_ref    : VMEM (1, TOK, H)       (output tile)
      w_buf    : VMEM (TOK, H) scratch  (gathered word rows)
      w_sem    : DMA semaphore
    """
    tok, h = w_buf.shape
    vocab = word_hbm.shape[0]
    n_types = type_ref.shape[0]

    t = pl.program_id(0)
    b = pl.program_id(1)
    s_pad = pl.num_programs(0) * tok
    base = b * s_pad + t * tok

    # ---- data-dependent word-row gather: HBM -> contiguous VMEM scratch ----
    @pl.loop(0, tok)
    def _issue(k):
        row = jnp.clip(ids_ref[base + k], 0, vocab - 1)
        pltpu.make_async_copy(word_hbm.at[pl.ds(row, 1)],
                              w_buf.at[pl.ds(k, 1)], w_sem).start()

    @pl.loop(0, tok)
    def _drain(k):
        # Dummy src index; the wait only needs a descriptor of matching size + the sem.
        pltpu.make_async_copy(word_hbm.at[pl.ds(0, 1)],
                              w_buf.at[pl.ds(k, 1)], w_sem).wait()

    # ---- assemble embeddings on the full (TOK, H) slab (f32 math) ----
    e = w_buf[...].astype(jnp.float32) + pos_ref[...].astype(jnp.float32)

    # Token-type contribution from the resident table: per-type masked select (T is tiny).
    type_f = type_ref[...].astype(jnp.float32)          # (T, H)
    tt_col = tts_ref[0]                                  # (TOK, 1) int32
    for ti in range(n_types):
        e = e + jnp.where(tt_col == ti, type_f[ti][None, :], 0.0)

    # ---- LayerNorm over hidden axis (biased variance, matching torch.nn.LayerNorm) ----
    mu = jnp.mean(e, axis=-1, keepdims=True)
    var = jnp.mean(jnp.square(e - mu), axis=-1, keepdims=True)
    y = (e - mu) * jax.lax.rsqrt(var + eps)
    y = y * gamma_ref[...].astype(jnp.float32) + beta_ref[...].astype(jnp.float32)

    # Dropout is Identity in eval mode.
    o_ref[...] = y[None, :, :].astype(o_ref.dtype)


def bert_embeddings(input_ids, token_type_ids, word_table, pos_table, type_table,
                    ln_gamma, ln_beta, *, eps: float = 1e-12, tok: int = 256,
                    out_dtype=None):
    """input_ids, token_type_ids: [B, S] int32; word/pos/type tables: [V,H]/[P,H]/[T,H];
    ln_gamma, ln_beta: [H]  ->  [B, S, H] (dtype = out_dtype or word_table.dtype)."""
    B, S = input_ids.shape
    V, H = word_table.shape
    P = pos_table.shape[0]
    T = type_table.shape[0]
    out_dtype = jnp.dtype(out_dtype) if out_dtype is not None else word_table.dtype

    if token_type_ids is None:
        token_type_ids = jnp.zeros_like(input_ids)

    # Tile size: multiple of 8, no larger than the (8-rounded) sequence length.
    tok = max(8, min(_round_up(tok, 8), _round_up(S, 8)))
    s_pad = _round_up(S, tok)
    n_t = s_pad // tok
    pad = s_pad - S

    ids = jnp.pad(input_ids.astype(jnp.int32), ((0, 0), (0, pad)))
    tts = jnp.pad(token_type_ids.astype(jnp.int32), ((0, 0), (0, pad)))
    ids_flat = ids.reshape(B * s_pad)
    tts3 = tts.reshape(B, s_pad, 1)        # lane dim 1 -> (TOK,1) sublane layout in kernel

    # Position rows covering [0, s_pad): slice (or zero-pad, padded tokens get sliced off).
    if P >= s_pad:
        pos_pad = pos_table[:s_pad]
    else:
        pos_pad = jnp.pad(pos_table, ((0, s_pad - P), (0, 0)))

    gamma2 = ln_gamma.reshape(1, H)
    beta2 = ln_beta.reshape(1, H)

    in_specs = [
        pl.BlockSpec(memory_space=pl.ANY),                             # word table in HBM
        pl.BlockSpec((1, tok, 1), lambda t, b, ids: (b, t, 0)),        # token-type ids tile
        pl.BlockSpec((tok, H), lambda t, b, ids: (t, 0)),              # position rows tile
        pl.BlockSpec((T, H), lambda t, b, ids: (0, 0)),                # type table (resident)
        pl.BlockSpec((1, H), lambda t, b, ids: (0, 0)),                # LN gamma (resident)
        pl.BlockSpec((1, H), lambda t, b, ids: (0, 0)),                # LN beta  (resident)
    ]
    out_specs = pl.BlockSpec((1, tok, H), lambda t, b, ids: (b, t, 0))

    # Generous VMEM budget estimate (double-buffered out + pos, gather scratch, small rest).
    elt_in = word_table.dtype.itemsize
    elt_out = out_dtype.itemsize
    vmem_need = (2 * tok * H * elt_out + 2 * tok * H * pos_pad.dtype.itemsize
                 + tok * H * elt_in + 2 * tok * 128 * 4
                 + 8 * max(H, 128) * 4)
    vmem_limit = int(min(100 * 2**20, max(24 * 2**20, 2 * vmem_need)))

    kernel = functools.partial(_bert_embeddings_kernel, eps=eps)

    out = pl.pallas_call(
        kernel,
        out_shape=jax.ShapeDtypeStruct((B, s_pad, H), out_dtype),
        grid_spec=pltpu.PrefetchScalarGridSpec(
            num_scalar_prefetch=1,
            grid=(n_t, B),                 # batch innermost -> position tile not refetched
            in_specs=in_specs,
            out_specs=out_specs,
            scratch_shapes=[pltpu.VMEM((tok, H), word_table.dtype),
                            pltpu.SemaphoreType.DMA],
        ),
        compiler_params=pltpu.CompilerParams(
            dimension_semantics=("parallel", "parallel"),
            vmem_limit_bytes=vmem_limit),
    )(ids_flat, word_table, tts3, pos_pad, type_table, gamma2, beta2)

    return out[:, :S, :]


def _reference(input_ids, token_type_ids, word_table, pos_table, type_table,
               gamma, beta, eps=1e-12):
    S = input_ids.shape[1]
    e = (word_table[input_ids]
         + pos_table[jnp.arange(S)][None, :, :]
         + type_table[token_type_ids])
    e = e.astype(jnp.float32)
    mu = e.mean(axis=-1, keepdims=True)
    var = jnp.square(e - mu).mean(axis=-1, keepdims=True)
    return (e - mu) * jax.lax.rsqrt(var + eps) * gamma + beta


def _make_case(key, B, S, H, V, P, T):
    k_ids, k_tt, k_w, k_p, k_t, k_g, k_b = jax.random.split(key, 7)
    initializer_range = 0.02   # matches init_weights(...)
    input_ids = jax.random.randint(k_ids, (B, S), 0, V, dtype=jnp.int32)
    token_type_ids = jax.random.randint(k_tt, (B, S), 0, T, dtype=jnp.int32)
    word_table = jax.random.normal(k_w, (V, H), jnp.float32) * initializer_range
    pos_table = jax.random.normal(k_p, (P, H), jnp.float32) * initializer_range
    type_table = jax.random.normal(k_t, (T, H), jnp.float32) * initializer_range
    # LayerNorm init is weight=1 / bias=0; perturb so scale/shift are exercised.
    ln_gamma = 1.0 + 0.1 * jax.random.normal(k_g, (H,), jnp.float32)
    ln_beta = 0.1 * jax.random.normal(k_b, (H,), jnp.float32)
    return input_ids, token_type_ids, word_table, pos_table, type_table, ln_gamma, ln_beta


if __name__ == "__main__":
    key = jax.random.PRNGKey(0)
    k1, k2 = jax.random.split(key)

    # Case 1: small shapes consistent with the module (single tile).
    args1 = _make_case(k1, B=2, S=8, H=32, V=64, P=16, T=2)
    out1 = jax.block_until_ready(bert_embeddings(*args1, tok=256))
    ref1 = _reference(*args1)
    assert out1.shape == ref1.shape, (out1.shape, ref1.shape)
    assert jnp.allclose(out1, ref1, atol=1e-5, rtol=1e-5), "case 1 mismatch vs. reference"

    # Case 2: multi-tile + ragged tail (S not a multiple of the tile) + lane-dense H.
    args2 = _make_case(k2, B=2, S=24, H=128, V=128, P=40, T=2)
    out2 = jax.block_until_ready(bert_embeddings(*args2, tok=16))
    ref2 = _reference(*args2)
    assert out2.shape == ref2.shape, (out2.shape, ref2.shape)
    assert jnp.allclose(out2, ref2, atol=1e-5, rtol=1e-5), "case 2 mismatch vs. reference"

    print("KERNEL_OK")
</pallas_src>

<mosaic_0001>
module attributes {stable_mosaic.version = 11 : i64} {
  func.func @_bert_embeddings_kernel(%arg0: i32, %arg1: i32, %arg2: memref<16xi32, #tpu.memory_space<smem>>, %arg3: memref<64x32xf32, #tpu.memory_space<any>>, %arg4: memref<1x8x1xi32, #tpu.memory_space<vmem>>, %arg5: memref<8x32xf32, #tpu.memory_space<vmem>>, %arg6: memref<2x32xf32, #tpu.memory_space<vmem>>, %arg7: memref<1x32xf32, #tpu.memory_space<vmem>>, %arg8: memref<1x32xf32, #tpu.memory_space<vmem>>, %arg9: memref<1x8x32xf32, #tpu.memory_space<vmem>>, %arg10: memref<8x32xf32, #tpu.memory_space<vmem>>, %arg11: memref<!tpu.dma_semaphore, #tpu.memory_space<semaphore_mem>>) attributes {dimension_semantics = [#tpu.dimension_semantics<parallel>, #tpu.dimension_semantics<parallel>], iteration_bounds = array<i64: 1, 2>, scalar_prefetch = 1 : i64, scratch_operands = 2 : i64, tpu.core_type = #tpu.core_type<tc>, window_params = [{}, {transform_indices = @transform_1, window_bounds = array<i64: 1, 8, 1>}, {transform_indices = @transform_2, window_bounds = array<i64: 8, 32>}, {pipeline_mode = #tpu.pipeline_mode<synchronous>, transform_indices = @transform_3, window_bounds = array<i64: 2, 32>}, {pipeline_mode = #tpu.pipeline_mode<synchronous>, transform_indices = @transform_4, window_bounds = array<i64: 1, 32>}, {pipeline_mode = #tpu.pipeline_mode<synchronous>, transform_indices = @transform_5, window_bounds = array<i64: 1, 32>}, {transform_indices = @transform_6, window_bounds = array<i64: 1, 8, 32>}]} {
    %c8_i32 = arith.constant 8 : i32
    %0 = arith.muli %arg1, %c8_i32 : i32
    %c8_i32_0 = arith.constant 8 : i32
    %1 = arith.muli %arg0, %c8_i32_0 : i32
    %2 = arith.addi %0, %1 : i32
    %c0_i32 = arith.constant 0 : i32
    %c8_i32_1 = arith.constant 8 : i32
    %3 = arith.addi %c0_i32, %c8_i32_1 : i32
    %c1_i32 = arith.constant 1 : i32
    scf.for %arg12 = %c0_i32 to %3 step %c1_i32  : i32 {
      %c1_i32_30 = arith.constant 1 : i32
      %61 = arith.muli %arg12, %c1_i32_30 : i32
      %c0_i32_31 = arith.constant 0 : i32
      %62 = arith.addi %c0_i32_31, %61 : i32
      %63 = arith.addi %2, %62 : i32
      %64 = arith.index_cast %63 : i32 to index
      %65 = memref.load %arg2[%64] : memref<16xi32, #tpu.memory_space<smem>>
      %c0_i32_32 = arith.constant 0 : i32
      %c63_i32 = arith.constant 63 : i32
      %66 = arith.maxsi %c0_i32_32, %65 : i32
      %67 = arith.minsi %c63_i32, %66 : i32
      %c0_i32_33 = arith.constant 0 : i32
      %68 = tpu.memref_slice %arg3[%67, %c0_i32_33] : memref<64x32xf32, #tpu.memory_space<any>> -> memref<1x32xf32, #tpu.memory_space<any>>
      %c0_i32_34 = arith.constant 0 : i32
      %69 = tpu.memref_slice %arg10[%62, %c0_i32_34] : memref<8x32xf32, #tpu.memory_space<vmem>> -> memref<1x32xf32, #tpu.memory_space<vmem>>
      tpu.enqueue_dma source(%68 : memref<1x32xf32, #tpu.memory_space<any>>) target(%69 : memref<1x32xf32, #tpu.memory_space<vmem>>) target_semaphore(%arg11 : memref<!tpu.dma_semaphore, #tpu.memory_space<semaphore_mem>>)
    }
    %c8_i32_2 = arith.constant 8 : i32
    %c0_i32_3 = arith.constant 0 : i32
    %c8_i32_4 = arith.constant 8 : i32
    %4 = arith.addi %c0_i32_3, %c8_i32_4 : i32
    %c1_i32_5 = arith.constant 1 : i32
    scf.for %arg12 = %c0_i32_3 to %4 step %c1_i32_5  : i32 {
      %c1_i32_30 = arith.constant 1 : i32
      %61 = arith.muli %arg12, %c1_i32_30 : i32
      %c0_i32_31 = arith.constant 0 : i32
      %62 = arith.addi %c0_i32_31, %61 : i32
      %c0_i32_32 = arith.constant 0 : i32
      %c0_i32_33 = arith.constant 0 : i32
      %63 = tpu.memref_slice %arg3[%c0_i32_32, %c0_i32_33] : memref<64x32xf32, #tpu.memory_space<any>> -> memref<1x32xf32, #tpu.memory_space<any>>
      %c0_i32_34 = arith.constant 0 : i32
      %64 = tpu.memref_slice %arg10[%62, %c0_i32_34] : memref<8x32xf32, #tpu.memory_space<vmem>> -> memref<1x32xf32, #tpu.memory_space<vmem>>
      tpu.wait_dma2 semaphore(%arg11 : memref<!tpu.dma_semaphore, #tpu.memory_space<semaphore_mem>>) src(%63 : memref<1x32xf32, #tpu.memory_space<any>>) dst(%64 : memref<1x32xf32, #tpu.memory_space<vmem>>)
    }
    %c8_i32_6 = arith.constant 8 : i32
    %c0 = arith.constant 0 : index
    %c0_7 = arith.constant 0 : index
    %5 = vector.load %arg10[%c0, %c0_7] : memref<8x32xf32, #tpu.memory_space<vmem>>, vector<8x32xf32>
    %c0_8 = arith.constant 0 : index
    %c0_9 = arith.constant 0 : index
    %6 = vector.load %arg5[%c0_8, %c0_9] : memref<8x32xf32, #tpu.memory_space<vmem>>, vector<8x32xf32>
    %7 = arith.addf %5, %6 : vector<8x32xf32>
    %c0_10 = arith.constant 0 : index
    %c0_11 = arith.constant 0 : index
    %8 = vector.load %arg6[%c0_10, %c0_11] : memref<2x32xf32, #tpu.memory_space<vmem>>, vector<2x32xf32>
    %c0_12 = arith.constant 0 : index
    %c0_13 = arith.constant 0 : index
    %c0_14 = arith.constant 0 : index
    %9 = vector.load %arg4[%c0_12, %c0_13, %c0_14] : memref<1x8x1xi32, #tpu.memory_space<vmem>>, vector<1x8x1xi32>
    %10 = vector.shape_cast %9 : vector<1x8x1xi32> to vector<8x1xi32>
    %c0_i32_15 = arith.constant 0 : i32
    %11 = vector.broadcast %c0_i32_15 : i32 to vector<8x1xi32>
    %12 = arith.cmpi eq, %10, %11 : vector<8x1xi32>
    %13 = vector.extract_strided_slice %8 {offsets = [0, 0], sizes = [1, 32], strides = [1, 1]} : vector<2x32xf32> to vector<1x32xf32>
    %14 = vector.shape_cast %13 : vector<1x32xf32> to vector<32xf32>
    %15 = vector.shape_cast %14 : vector<32xf32> to vector<1x32xf32>
    %cst = arith.constant 0.000000e+00 : f32
    %16 = vector.shape_cast %12 : vector<8x1xi1> to vector<8x1xi1>
    %17 = vector.broadcast %16 : vector<8x1xi1> to vector<8x32xi1>
    %18 = vector.shape_cast %15 : vector<1x32xf32> to vector<1x32xf32>
    %19 = vector.broadcast %18 : vector<1x32xf32> to vector<8x32xf32>
    %20 = vector.broadcast %cst : f32 to vector<8x32xf32>
    %21 = arith.select %17, %19, %20 : vector<8x32xi1>, vector<8x32xf32>
    %22 = arith.addf %7, %21 : vector<8x32xf32>
    %c1_i32_16 = arith.constant 1 : i32
    %23 = vector.broadcast %c1_i32_16 : i32 to vector<8x1xi32>
    %24 = arith.cmpi eq, %10, %23 : vector<8x1xi32>
    %25 = vector.extract_strided_slice %8 {offsets = [1, 0], sizes = [1, 32], strides = [1, 1]} : vector<2x32xf32> to vector<1x32xf32>
    %26 = vector.shape_cast %25 : vector<1x32xf32> to vector<32xf32>
    %27 = vector.shape_cast %26 : vector<32xf32> to vector<1x32xf32>
    %cst_17 = arith.constant 0.000000e+00 : f32
    %28 = vector.shape_cast %24 : vector<8x1xi1> to vector<8x1xi1>
    %29 = vector.broadcast %28 : vector<8x1xi1> to vector<8x32xi1>
    %30 = vector.shape_cast %27 : vector<1x32xf32> to vector<1x32xf32>
    %31 = vector.broadcast %30 : vector<1x32xf32> to vector<8x32xf32>
    %32 = vector.broadcast %cst_17 : f32 to vector<8x32xf32>
    %33 = arith.select %29, %31, %32 : vector<8x32xi1>, vector<8x32xf32>
    %34 = arith.addf %22, %33 : vector<8x32xf32>
    %cst_18 = arith.constant dense<0.000000e+00> : vector<8xf32>
    %35 = vector.multi_reduction <add>, %34, %cst_18 [1] : vector<8x32xf32> to vector<8xf32>
    %36 = vector.shape_cast %35 : vector<8xf32> to vector<8x1xf32>
    %cst_19 = arith.constant 3.200000e+01 : f32
    %37 = vector.broadcast %cst_19 : f32 to vector<8x1xf32>
    %38 = arith.divf %36, %37 : vector<8x1xf32>
    %39 = vector.broadcast %38 : vector<8x1xf32> to vector<8x32xf32>
    %40 = arith.subf %34, %39 : vector<8x32xf32>
    %41 = arith.mulf %40, %40 : vector<8x32xf32>
    %cst_20 = arith.constant dense<0.000000e+00> : vector<8xf32>
    %42 = vector.multi_reduction <add>, %41, %cst_20 [1] : vector<8x32xf32> to vector<8xf32>
    %43 = vector.shape_cast %42 : vector<8xf32> to vector<8x1xf32>
    %cst_21 = arith.constant 3.200000e+01 : f32
    %44 = vector.broadcast %cst_21 : f32 to vector<8x1xf32>
    %45 = arith.divf %43, %44 : vector<8x1xf32>
    %46 = vector.broadcast %38 : vector<8x1xf32> to vector<8x32xf32>
    %47 = arith.subf %34, %46 : vector<8x32xf32>
    %cst_22 = arith.constant 9.99999996E-13 : f32
    %48 = vector.broadcast %cst_22 : f32 to vector<8x1xf32>
    %49 = arith.addf %45, %48 : vector<8x1xf32>
    %50 = math.rsqrt %49 : vector<8x1xf32>
    %51 = vector.broadcast %50 : vector<8x1xf32> to vector<8x32xf32>
    %52 = arith.mulf %47, %51 : vector<8x32xf32>
    %c0_23 = arith.constant 0 : index
    %c0_24 = arith.constant 0 : index
    %53 = vector.load %arg7[%c0_23, %c0_24] : memref<1x32xf32, #tpu.memory_space<vmem>>, vector<1x32xf32>
    %54 = vector.broadcast %53 : vector<1x32xf32> to vector<8x32xf32>
    %55 = arith.mulf %52, %54 : vector<8x32xf32>
    %c0_25 = arith.constant 0 : index
    %c0_26 = arith.constant 0 : index
    %56 = vector.load %arg8[%c0_25, %c0_26] : memref<1x32xf32, #tpu.memory_space<vmem>>, vector<1x32xf32>
    %57 = vector.broadcast %56 : vector<1x32xf32> to vector<8x32xf32>
    %58 = arith.addf %55, %57 : vector<8x32xf32>
    %59 = vector.shape_cast %58 : vector<8x32xf32> to vector<1x8x32xf32>
    %c0_27 = arith.constant 0 : index
    %c0_28 = arith.constant 0 : index
    %c0_29 = arith.constant 0 : index
    %60 = vector.load %arg9[%c0_27, %c0_28, %c0_29] : memref<1x8x32xf32, #tpu.memory_space<vmem>>, vector<1x8x32xf32>
    tpu.vector_store %arg9[%c0_27, %c0_28, %c0_29], %59 {strides = array<i32>} : memref<1x8x32xf32, #tpu.memory_space<vmem>>, vector<1x8x32xf32>,
    return
  }
  func.func @transform_1(%arg0: i32, %arg1: i32, %arg2: memref<16xi32, #tpu.memory_space<smem>>) -> (i32, i32, i32) {
    %c0_i32 = arith.constant 0 : i32
    %c0_i32_0 = arith.constant 0 : i32
    return %arg1, %arg0, %c0_i32 : i32, i32, i32
  }
  func.func @transform_2(%arg0: i32, %arg1: i32, %arg2: memref<16xi32, #tpu.memory_space<smem>>) -> (i32, i32) {
    %c0_i32 = arith.constant 0 : i32
    %c0_i32_0 = arith.constant 0 : i32
    return %arg0, %c0_i32 : i32, i32
  }
  func.func @transform_3(%arg0: i32, %arg1: i32, %arg2: memref<16xi32, #tpu.memory_space<smem>>) -> (i32, i32) {
    %c0_i32 = arith.constant 0 : i32
    %c0_i32_0 = arith.constant 0 : i32
    %c0_i32_1 = arith.constant 0 : i32
    return %c0_i32, %c0_i32_0 : i32, i32
  }
  func.func @transform_4(%arg0: i32, %arg1: i32, %arg2: memref<16xi32, #tpu.memory_space<smem>>) -> (i32, i32) {
    %c0_i32 = arith.constant 0 : i32
    %c0_i32_0 = arith.constant 0 : i32
    %c0_i32_1 = arith.constant 0 : i32
    return %c0_i32, %c0_i32_0 : i32, i32
  }
  func.func @transform_5(%arg0: i32, %arg1: i32, %arg2: memref<16xi32, #tpu.memory_space<smem>>) -> (i32, i32) {
    %c0_i32 = arith.constant 0 : i32
    %c0_i32_0 = arith.constant 0 : i32
    %c0_i32_1 = arith.constant 0 : i32
    return %c0_i32, %c0_i32_0 : i32, i32
  }
  func.func @transform_6(%arg0: i32, %arg1: i32, %arg2: memref<16xi32, #tpu.memory_space<smem>>) -> (i32, i32, i32) {
    %c0_i32 = arith.constant 0 : i32
    %c0_i32_0 = arith.constant 0 : i32
    return %arg1, %arg0, %c0_i32 : i32, i32, i32
  }
}

</mosaic_0001>

<llo_original>
// kernel: tpu_custom_call.1
$region0: #{tpu_custom_call.1}
  #allocation0 [shape = 'u32[]', space=smem, size = 0x4, offset = 0x4, fixed_abs, tag = 'smem constant byte address 0x4 - core index']
  #allocation1 [shape = 'u32[144,128]{1,0:T(1,128)}', space=vmem, size = 0x12000, scoped, tag = 'internal scratch']
  #allocation2 [shape = 'f32[8,32]{1,0:T(8,128)}', space=vmem, size = 0x1000, scoped, tag = 'scratch operand']
  #allocation3 [shape = 's32[1]{0}', space=sflag, size = 0x4, scoped, tag = 'scratch operand']
  #allocation4 [shape = 's32[1]{0}', space=sflag, size = 0x4, scoped, tag = 'scoped memory for tpu_custom_call.1']
  #allocation5 [shape = 'u8[512]{0}', space=smem, size = 0x200, scoped, tag = 'prefetched SMEM operand 0']
  #allocation8 [shape = 's32[]', space=sflag, size = 0x4, offset = 0, fixed_abs, tag = 'sflag constant byte address 0x0 - dummy sync flag']
  %s0 = inlined_call_operand.vmem [shape: s32[16], index: 0, kind: input, shape index: {}]
  %s1 = inlined_call_operand.vmem [shape: f32[64,32], index: 1, kind: input, shape index: {}]
  %s2 = inlined_call_operand.vmem [shape: s32[2,8,1], index: 2, kind: input, shape index: {}]
  %s3 = inlined_call_operand.vmem [shape: f32[8,32], index: 3, kind: input, shape index: {}]
  %s4 = inlined_call_operand.vmem [shape: f32[2,32], index: 4, kind: input, shape index: {}]
  %s5 = inlined_call_operand.vmem [shape: f32[1,32], index: 5, kind: input, shape index: {}]
  %s6 = inlined_call_operand.vmem [shape: f32[1,32], index: 6, kind: input, shape index: {}]
  %s7 = inlined_call_operand.hbm [shape: f32[2,8,32], index: 7, kind: output, shape index: {}]
  %s8 = sld [smem:[#allocation0]]
  $region97: #{tpu_custom_call.1} parent=0
    _
  %s10 = ssub.s32 1, %s8
  %s11 = scalar_select 0, %s10, %s8
  %s12 = sshll.u32 %s0, 4
  %s13 = int_to_ptr.vmem [resolvable:$true] %s12
  %15 = dma.vmem_to_smem %s13, 16, [#allocation5], [#allocation4]
  %16 = dma.done [#allocation4], 16
  %17 = sfence
  $region1: #{tpu_custom_call.1} parent=0
    #allocation6 [shape = 'u8[8192]{0}', space=vmem, size = 0x2000, scoped, tag = 'output window, operand 0']
    #allocation7 [shape = 's32[2]{0}', space=sflag, size = 0x8, scoped, tag = 'scoped memory for tpu_custom_call.1']
    %18 = vsyncpa [#allocation7], 0
    %s19 = scalar_lea.sflag [#allocation7], 1
    %20 = vsyncpa %s19, 0
    loop: start=0, step=1, limit=4
    $region2: #{tpu_custom_call.1} parent=1 // loop_pre_header
      _
    $region3: #{tpu_custom_call.1} parent=1 // loop_header
      %s22 = sphi 0, %s26
      %p23 = scmp.ge.s32.totalorder %s22, 4
      %s29 = sphi 0, %s41
      %s30 = sphi 0, %s37
      %s31 = sphi 0, %s29
      %s32 = sphi 0, %s30
      %s33 = sphi 0, %s31
      %s34 = sphi 0, %s32
      %s46 = sphi 0, %s48
      %s49 = sphi 0, %s46
      %s50 = sphi 0, %s49
      %s66 = sphi 0, %s50
      %s72 = sphi 0, %s74
      %s75 = sphi 0, %s72
      %s76 = sphi 0, %s75
      %s92 = sphi 0, %s76
      %s96 = sphi 0, %s96
      %s98 = sphi 0, %s96
      %s99 = sphi 0, %s98
      %s113 = sphi 0, %s99
      %s117 = sphi 0, %s117
      %s119 = sphi 0, %s117
      %s120 = sphi 0, %s119
      %s134 = sphi 0, %s120
      %s138 = sphi 0, %s138
      %s140 = sphi 0, %s138
      %s141 = sphi 0, %s140
      %s155 = sphi 0, %s141
      %s163 = sphi 0, %s165
      %s166 = sphi 0, %s163
      %s167 = sphi 0, %s166
      %s183 = sphi 0, %s167
    $region4: #{tpu_custom_call.1} parent=1 // loop_header_branch
      %25 = sbr.rel (%p23) target = $region8
    $region5: #{tpu_custom_call.1} parent=1 // loop_body
      %s27 = ssub.s32 %s22, 1
      %s28 = ssub.s32 %s22, 2
      %s35 = sadd.s32 1, %s30
      %p36 = scmp.ge.s32.totalorder %s35, 2
      %s37 = scalar_select %p36, 0, %s35
      %s38 = sadd.s32 1, %s29
      %s39 = scalar_select %p36, %s38, %s29
      %p40 = scmp.ge.s32.totalorder %s39, 1
      %s41 = scalar_select %p40, 0, %s39
      %s42 = ssub.s32 %s30, %s37
      %s43 = ssub.s32 %s29, %s41
      %s44 = sor.u32 %s42, %s43
      %p45 = scmp.eq.s32.totalorder %s44, 0
      %s47 = sadd.s32 %s46, 1
      %s48 = scalar_select %p45, %s46, %s47
      %p51 = pneg %p45
      %p52 = scmp.eq.s32.totalorder %s22, 1
      %p53 = por %p51, %p52
      %p54 = scmp.ne.s32.totalorder %s46, %s49
      %p55 = scmp.eq.s32.totalorder %s22, 0
      %p56 = por %p54, %p55
      %p57 = scmp.ne.s32.totalorder %s46, %s49
      %p58 = scmp.eq.s32.totalorder %s27, 1
      %p59 = por %p57, %p58
      %p60 = scmp.ne.s32.totalorder %s49, %s50
      %p61 = scmp.eq.s32.totalorder %s27, 0
      %p62 = por %p60, %p61
      %p63 = scmp.ne.s32.totalorder %s49, %s50
      %p64 = scmp.eq.s32.totalorder %s28, 1
      %p65 = por %p63, %p64
      %p67 = scmp.ne.s32.totalorder %s50, %s66
      %p68 = scmp.eq.s32.totalorder %s28, 0
      %p69 = por %p67, %p68
      %s70 = ssub.s32 %s29, %s41
      %p71 = scmp.eq.s32.totalorder %s70, 0
      %s73 = sadd.s32 %s72, 1
      %s74 = scalar_select %p71, %s72, %s73
      %p77 = pneg %p71
      %p78 = scmp.eq.s32.totalorder %s22, 1
      %p79 = por %p77, %p78
      %p80 = scmp.ne.s32.totalorder %s72, %s75
      %p81 = scmp.eq.s32.totalorder %s22, 0
      %p82 = por %p80, %p81
      %p83 = scmp.ne.s32.totalorder %s72, %s75
      %p84 = scmp.eq.s32.totalorder %s27, 1
      %p85 = por %p83, %p84
      %p86 = scmp.ne.s32.totalorder %s75, %s76
      %p87 = scmp.eq.s32.totalorder %s27, 0
      %p88 = por %p86, %p87
      %p89 = scmp.ne.s32.totalorder %s75, %s76
      %p90 = scmp.eq.s32.totalorder %s28, 1
      %p91 = por %p89, %p90
      %p93 = scmp.ne.s32.totalorder %s76, %s92
      %p94 = scmp.eq.s32.totalorder %s28, 0
      %p95 = por %p93, %p94
      %s97 = sadd.s32 %s96, 1
      %p100 = scmp.eq.s32.totalorder %s22, 1
      %p101 = scmp.ne.s32.totalorder %s96, %s98
      %p102 = scmp.eq.s32.totalorder %s22, 0
      %p103 = por %p101, %p102
      %p104 = scmp.ne.s32.totalorder %s96, %s98
      %p105 = scmp.eq.s32.totalorder %s27, 1
      %p106 = por %p104, %p105
      %p107 = scmp.ne.s32.totalorder %s98, %s99
      %p108 = scmp.eq.s32.totalorder %s27, 0
      %p109 = por %p107, %p108
      %p110 = scmp.ne.s32.totalorder %s98, %s99
      %p111 = scmp.eq.s32.totalorder %s28, 1
      %p112 = por %p110, %p111
      %p114 = scmp.ne.s32.totalorder %s99, %s113
      %p115 = scmp.eq.s32.totalorder %s28, 0
      %p116 = por %p114, %p115
      %s118 = sadd.s32 %s117, 1
      %p121 = scmp.eq.s32.totalorder %s22, 1
      %p122 = scmp.ne.s32.totalorder %s117, %s119
      %p123 = scmp.eq.s32.totalorder %s22, 0
      %p124 = por %p122, %p123
      %p125 = scmp.ne.s32.totalorder %s117, %s119
      %p126 = scmp.eq.s32.totalorder %s27, 1
      %p127 = por %p125, %p126
      %p128 = scmp.ne.s32.totalorder %s119, %s120
      %p129 = scmp.eq.s32.totalorder %s27, 0
      %p130 = por %p128, %p129
      %p131 = scmp.ne.s32.totalorder %s119, %s120
      %p132 = scmp.eq.s32.totalorder %s28, 1
      %p133 = por %p131, %p132
      %p135 = scmp.ne.s32.totalorder %s120, %s134
      %p136 = scmp.eq.s32.totalorder %s28, 0
      %p137 = por %p135, %p136
      %s139 = sadd.s32 %s138, 1
      %p142 = scmp.eq.s32.totalorder %s22, 1
      %p143 = scmp.ne.s32.totalorder %s138, %s140
      %p144 = scmp.eq.s32.totalorder %s22, 0
      %p145 = por %p143, %p144
      %p146 = scmp.ne.s32.totalorder %s138, %s140
      %p147 = scmp.eq.s32.totalorder %s27, 1
      %p148 = por %p146, %p147
      %p149 = scmp.ne.s32.totalorder %s140, %s141
      %p150 = scmp.eq.s32.totalorder %s27, 0
      %p151 = por %p149, %p150
      %p152 = scmp.ne.s32.totalorder %s140, %s141
      %p153 = scmp.eq.s32.totalorder %s28, 1
      %p154 = por %p152, %p153
      %p156 = scmp.ne.s32.totalorder %s141, %s155
      %p157 = scmp.eq.s32.totalorder %s28, 0
      %p158 = por %p156, %p157
      %s159 = ssub.s32 %s30, %s37
      %s160 = ssub.s32 %s29, %s41
      %s161 = sor.u32 %s159, %s160
      %p162 = scmp.eq.s32.totalorder %s161, 0
      %s164 = sadd.s32 %s163, 1
      %s165 = scalar_select %p162, %s163, %s164
      %p168 = pneg %p162
      %p169 = scmp.eq.s32.totalorder %s22, 1
      %p170 = por %p168, %p169
      %p171 = scmp.ne.s32.totalorder %s163, %s166
      %p172 = scmp.eq.s32.totalorder %s22, 0
      %p173 = por %p171, %p172
      %p174 = scmp.ne.s32.totalorder %s163, %s166
      %p175 = scmp.eq.s32.totalorder %s27, 1
      %p176 = por %p174, %p175
      %p177 = scmp.ne.s32.totalorder %s166, %s167
      %p178 = scmp.eq.s32.totalorder %s27, 0
      %p179 = por %p177, %p178
      %p180 = scmp.ne.s32.totalorder %s166, %s167
      %p181 = scmp.eq.s32.totalorder %s28, 1
      %p182 = por %p180, %p181
      %p184 = scmp.ne.s32.totalorder %s167, %s183
      %p185 = scmp.eq.s32.totalorder %s28, 0
      %p186 = por %p184, %p185
      %p187 = scmp.le.s32.totalorder 1, %s22
      %p188 = scmp.lt.s32.totalorder %s22, 3
      %p189 = pnand %p187, %p188
      %p190 = pneg %p189
      // Predicated region
      $region9: #{tpu_custom_call.1} parent=5 // pred_check
        _
      $region10: #{tpu_custom_call.1} parent=5 // pred_check_branch
        %192 = sbr.rel (%p189) target = $region12
      $region11: #{tpu_custom_call.1} parent=5 // pred_region
        %s193 = ssub.s32 %s22, 1
        // Predicated region
        $region13: #{tpu_custom_call.1} parent=11 // pred_check
          %p194 = pneg %p88
        $region14: #{tpu_custom_call.1} parent=11 // pred_check_branch
          %196 = sbr.rel (%p194) target = $region16
        $region15: #{tpu_custom_call.1} parent=11 // pred_region
          %p197 = scmp.lt.s32.totalorder %s31, 0
          %s198 = scalar_select %p197, %s31, 0
          %s199 = smul.addr %s198, 8
          %s200 = scalar_lea.vmem %s3, %s199
        $region16: #{tpu_custom_call.1} parent=11 // pred_fallthru
          _
        // Predicated region
        $region17: #{tpu_custom_call.1} parent=11 // pred_check
          %p201 = pneg %p109
        $region18: #{tpu_custom_call.1} parent=11 // pred_check_branch
          %203 = sbr.rel (%p201) target = $region20
        $region19: #{tpu_custom_call.1} parent=11 // pred_region
          _
        $region20: #{tpu_custom_call.1} parent=11 // pred_fallthru
          _
        // Predicated region
        $region21: #{tpu_custom_call.1} parent=11 // pred_check
          %p204 = pneg %p130
        $region22: #{tpu_custom_call.1} parent=11 // pred_check_branch
          %206 = sbr.rel (%p204) target = $region24
        $region23: #{tpu_custom_call.1} parent=11 // pred_region
          _
        $region24: #{tpu_custom_call.1} parent=11 // pred_fallthru
          _
        // Predicated region
        $region25: #{tpu_custom_call.1} parent=11 // pred_check
          %p207 = pneg %p151
        $region26: #{tpu_custom_call.1} parent=11 // pred_check_branch
          %209 = sbr.rel (%p207) target = $region28
        $region27: #{tpu_custom_call.1} parent=11 // pred_region
          _
        $region28: #{tpu_custom_call.1} parent=11 // pred_fallthru
          _
      $region12: #{tpu_custom_call.1} parent=5 // pred_fallthru
        _
      %p210 = scmp.lt.s32.totalorder %s22, 2
      // Predicated region
      $region29: #{tpu_custom_call.1} parent=5 // pred_check
        %p211 = pneg %p210
      $region30: #{tpu_custom_call.1} parent=5 // pred_check_branch
        %213 = sbr.rel (%p211) target = $region32
      $region31: #{tpu_custom_call.1} parent=5 // pred_region
        // Predicated region
        $region33: #{tpu_custom_call.1} parent=31 // pred_check
          %p214 = pneg %p56
        $region34: #{tpu_custom_call.1} parent=31 // pred_check_branch
          %216 = sbr.rel (%p214) target = $region36
        $region35: #{tpu_custom_call.1} parent=31 // pred_region
          %p217 = scmp.lt.s32.totalorder %s30, 1
          %s218 = scalar_select %p217, %s30, 1
          %p219 = scmp.lt.s32.totalorder %s29, 0
          %s220 = scalar_select %p219, %s29, 0
          %s221 = sadd.s32 %s220, %s218
          %s222 = smul.addr %s221, 8
          %s223 = scalar_lea.vmem %s2, %s222
        $region36: #{tpu_custom_call.1} parent=31 // pred_fallthru
          _
      $region32: #{tpu_custom_call.1} parent=5 // pred_fallthru
        _
      %p224 = scmp.le.s32.totalorder 1, %s22
      %p225 = scmp.lt.s32.totalorder %s22, 3
      %p226 = pnand %p224, %p225
      %p227 = pneg %p226
      // Predicated region
      $region37: #{tpu_custom_call.1} parent=5 // pred_check
        _
      $region38: #{tpu_custom_call.1} parent=5 // pred_check_branch
        %229 = sbr.rel (%p226) target = $region40
      $region39: #{tpu_custom_call.1} parent=5 // pred_region
        %s230 = ssub.s32 %s22, 1
        %p231 = scmp.lt.s32.totalorder %s32, 1
        %s232 = scalar_select %p231, %s32, 1
        %p233 = scmp.lt.s32.totalorder %s31, 0
        %s234 = scalar_select %p233, %s31, 0
        %s235 = sadd.s32 %s234, %s232
        %s236 = smul.addr %s235, 8
        %s237 = scalar_lea.vmem %s2, %s236
        %p238 = pneg %p62
        %p239 = pneg %p59
        %p240 = scmp.lt.s32.totalorder %s31, 0
        %s241 = scalar_select %p240, %s31, 0
        %s242 = smul.addr %s241, 8
        %s243 = scalar_lea.vmem %s3, %s242
        %p244 = pneg %p88
        %p245 = pneg %p85
        %p246 = pneg %p109
        %p247 = pneg %p106
        %p248 = pneg %p130
        %p249 = pneg %p127
        %p250 = pneg %p151
        %p251 = pneg %p148
        %p252 = pneg %p179
        %p253 = pneg %p176
        %s254 = sand.u32 %s166, 1
        %s255 = scalar_lea.sflag [#allocation7], %s254
        %s256 = sand.u32 %s166, 1
        %s257 = smul.addr %s256, 8
        %s258 = scalar_lea.vmem [#allocation6], %s257
        %p259 = scmp.lt.s32.totalorder %s32, 1
        %s260 = scalar_select %p259, %s32, 1
        %p261 = scmp.lt.s32.totalorder %s31, 0
        %s262 = scalar_select %p261, %s31, 0
        %s263 = sadd.s32 %s262, %s260
        %s264 = smul.addr %s263, 8
        %s265 = scalar_lea.vmem %s2, %s264
        %p266 = scmp.lt.s32.totalorder %s31, 0
        %s267 = scalar_select %p266, %s31, 0
        %s268 = smul.addr %s267, 8
        %s269 = scalar_lea.vmem %s3, %s268
        %s270 = smul.u32 %s32, 8
        %s271 = smul.u32 %s31, 8
        %s272 = sadd.s32 %s270, %s271
        loop: start=0, step=1, limit=8
        $region41: #{tpu_custom_call.1} parent=39 // loop_pre_header
          _
        $region42: #{tpu_custom_call.1} parent=39 // loop_header
          %s274 = sphi 0, %s278
          %p275 = scmp.ge.s32.totalorder %s274, 8
        $region43: #{tpu_custom_call.1} parent=39 // loop_header_branch
          %277 = sbr.rel (%p275) target = $region47
        $region44: #{tpu_custom_call.1} parent=39 // loop_body
          %s279 = sadd.s32 %s272, %s274
          %s280 = sld [smem:[#allocation5 + %s279]]
          %p281 = scmp.gt.s32.totalorder %s280, 0
          %s282 = scalar_select %p281, %s280, 0
          %p283 = scmp.lt.s32.totalorder %s282, 63
          %s284 = scalar_select %p283, %s282, 63
          %s285 = scalar_lea.vmem %s1, %s284
          %s286 = scalar_lea.vmem [#allocation2], %s274
          %p288 = scmp.lt.u32.totalorder 1, 8
          %p289 = pneg %p288
          // Predicated region
          $region48: #{tpu_custom_call.1} parent=44 // pred_check
            _
          $region49: #{tpu_custom_call.1} parent=44 // pred_check_branch
            %291 = sbr.rel (%p288) target = $region51
          $region50: #{tpu_custom_call.1} parent=44 // pred_region
            %s307 = sand.u32 1, 7
            %p308 = scmp.eq.s32.totalorder %s307, 0
            %p309 = pneg %p308
            // Predicated region
            $region63: #{tpu_custom_call.1} parent=50 // pred_check
              _
            $region64: #{tpu_custom_call.1} parent=50 // pred_check_branch
              %311 = sbr.rel (%p308) target = $region66
            $region65: #{tpu_custom_call.1} parent=50 // pred_region
              %s312 = sand.u32 1, 7
              %s313 = ssub.s32 1, %s312
              %s314 = scalar_lea.vmem %s285, %s313
              %s315 = ssub.s32 1, %s312
              %s316 = scalar_lea.vmem %s286, %s315 [#allocation2]
              %s317 = sshll.u32 1, %s312
              %s318 = ssub.s32 %s317, 1
              loop: start=0, step=1, limit=1
              $region67: #{tpu_custom_call.1} parent=65 // loop_pre_header
                _
              $region68: #{tpu_custom_call.1} parent=65 // loop_header
                %s320 = sphi 0, %s324
                %p321 = scmp.ge.s32.totalorder %s320, 1
                %s325 = sphi %s314, %s314
                %s326 = sphi %s316, %s316
              $region69: #{tpu_custom_call.1} parent=65 // loop_header_branch
                %323 = sbr.rel (%p321) target = $region73
              $region70: #{tpu_custom_call.1} parent=65 // loop_body
                %v327 = vld [vmem:[%s325] sm:%s318]
                %328 = vst [vmem:[%s326] sm:%s318] %v327
              $region71: #{tpu_custom_call.1} parent=65 // loop_footer
                %s324 = sadd.s32 1, %s320
              $region72: #{tpu_custom_call.1} parent=65 // loop_footer_branch
                %319 = sbr.rel target = $region68
              $region73: #{tpu_custom_call.1} parent=65 // loop_exit
                _
            $region66: #{tpu_custom_call.1} parent=50 // pred_fallthru
              _
          $region51: #{tpu_custom_call.1} parent=44 // pred_fallthru
            _
          // Predicated region
          $region52: #{tpu_custom_call.1} parent=44 // pred_check
            %p292 = pneg %p288
          $region53: #{tpu_custom_call.1} parent=44 // pred_check_branch
            %294 = sbr.rel (%p292) target = $region55
          $region54: #{tpu_custom_call.1} parent=44 // pred_region
            %s295 = sshll.u32 1, 1
            %s296 = ssub.s32 %s295, 1
            loop: start=0, step=1, limit=1
            $region56: #{tpu_custom_call.1} parent=54 // loop_pre_header
              _
            $region57: #{tpu_custom_call.1} parent=54 // loop_header
              %s298 = sphi 0, %s302
              %p299 = scmp.ge.s32.totalorder %s298, 1
              %s303 = sphi %s285, %s285
              %s304 = sphi %s286, %s286
            $region58: #{tpu_custom_call.1} parent=54 // loop_header_branch
              %301 = sbr.rel (%p299) target = $region62
            $region59: #{tpu_custom_call.1} parent=54 // loop_body
              %v305 = vld [vmem:[%s303] sm:%s296]
              %306 = vst [vmem:[%s304] sm:%s296] %v305
            $region60: #{tpu_custom_call.1} parent=54 // loop_footer
              %s302 = sadd.s32 1, %s298
            $region61: #{tpu_custom_call.1} parent=54 // loop_footer_branch
              %297 = sbr.rel target = $region57
            $region62: #{tpu_custom_call.1} parent=54 // loop_exit
              _
          $region55: #{tpu_custom_call.1} parent=44 // pred_fallthru
            _
          // Predicated region
          $region74: #{tpu_custom_call.1} parent=44 // pred_check
            _
          $region75: #{tpu_custom_call.1} parent=44 // pred_check_branch
            %331 = sbr.rel (0) target = $region77
          $region76: #{tpu_custom_call.1} parent=44 // pred_region
            %332 = vsyncadd [#allocation3], 16
          $region77: #{tpu_custom_call.1} parent=44 // pred_fallthru
            _
        $region45: #{tpu_custom_call.1} parent=39 // loop_footer
          %s278 = sadd.s32 1, %s274
        $region46: #{tpu_custom_call.1} parent=39 // loop_footer_branch
          %273 = sbr.rel target = $region42
        $region47: #{tpu_custom_call.1} parent=39 // loop_exit
          _
        loop: start=0, step=1, limit=8
        $region78: #{tpu_custom_call.1} parent=39 // loop_pre_header
          _
        $region79: #{tpu_custom_call.1} parent=39 // loop_header
          %s334 = sphi 0, %s338
          %p335 = scmp.ge.s32.totalorder %s334, 8
        $region80: #{tpu_custom_call.1} parent=39 // loop_header_branch
          %337 = sbr.rel (%p335) target = $region84
        $region81: #{tpu_custom_call.1} parent=39 // loop_body
          %s339 = smul.u32 1, 1
          %s340 = sshll.u32 %s339, 4
          %341 = dma.done [#allocation3], %s340
        $region82: #{tpu_custom_call.1} parent=39 // loop_footer
          %s338 = sadd.s32 1, %s334
        $region83: #{tpu_custom_call.1} parent=39 // loop_footer_branch
          %333 = sbr.rel target = $region79
        $region84: #{tpu_custom_call.1} parent=39 // loop_exit
          _
        %v342 = vld [vmem:[#allocation2] sm:$0xff]
        %v343 = vld [vmem:[%s269] sm:$0xff]
        %v344 = vadd.f32 %v342, %v343
        %v345 = vld [vmem:[%s4] sm:$0x3]
        %v346 = vld [vmem:[%s265] sm:$0xff]
        %vm347 = vcmp.eq.s32.totalorder %v346, 0
        %v348 = vsel %vm347, 1, 0
        %349 = vset.pattern.permute.xlu0 0
        %350 = vperm.xlu0 %349, %v348
        %v351 = vpop.permute.xlu0 %350
        %vm352 = vcmp.eq.s32.totalorder %v351, 1
        %v353 = vlaneseq
        %v354 = vshrl.u32 %v353, 7
        %v355 = vsub.s32 0, %v354
        %v356 = vrot.slane %v345, %v355
        %v357 = vsel %vm352, %v356, 0.0
        %v358 = vadd.f32 %v344, %v357
        %vm359 = vcmp.eq.s32.totalorder %v346, 1
        %v360 = vsel %vm359, 1, 0
        %361 = vset.pattern.permute.xlu0 0
        %362 = vperm.xlu0 %361, %v360
        %v363 = vpop.permute.xlu0 %362
        %vm364 = vcmp.eq.s32.totalorder %v363, 1
        %v365 = vlaneseq
        %v366 = vshrl.u32 %v365, 7
        %v367 = vsub.s32 1, %v366
        %v368 = vrot.slane %v345, %v367
        %v369 = vsel %vm364, %v368, 0.0
        %v370 = vadd.f32 %v358, %v369
        %vm371 = vcmask 261120
        %v372 = vsel %vm371, %v370, 0.0
        %373 = vadd.xlane.f32.xlu0 %v372
        %v374 = vpop.xlane.xlu0 %373
        %v375 = vrcp.pop 32.0
        %v376 = vmul.f32 %v374, %v375
        %v377 = vsub.f32 %v370, %v376
        %v378 = vmul.f32 %v377, %v377
        %v379 = vsel %vm371, %v378, 0.0
        %380 = vadd.xlane.f32.xlu0 %v379
        %v381 = vpop.xlane.xlu0 %380
        %v382 = vmul.f32 %v381, %v375
        %v383 = vadd.f32 %v382, 1e-12
        %v384 = vrsqrt.pop %v383
        %v385 = vmul.f32 %v377, %v384
        %v386 = vld [vmem:[%s5] sm:$0x1]
        %v388 = vlaneseq
        %v389 = vshrl.u32 %v388, 7
        %v390 = vsub.s32 0, %v389
        %v391 = vrot.slane %v386, %v390
        %v393 = vmul.f32 %v385, %v391
        %v394 = vld [vmem:[%s6] sm:$0x1]
        %v396 = vlaneseq
        %v397 = vshrl.u32 %v396, 7
        %v398 = vsub.s32 0, %v397
        %v399 = vrot.slane %v394, %v398
        %v401 = vadd.f32 %v393, %v399
        %402 = vst.msk [vmem:[%s258] sm:$0xff] %vm371, %v401
        %s403 = sand.u32 %s166, 1
        %s404 = scalar_lea.sflag [#allocation7], %s403
        %s405 = sand.u32 %s166, 1
        %s406 = smul.addr %s405, 8
        %s407 = scalar_lea.vmem [#allocation6], %s406
        // Predicated region
        $region85: #{tpu_custom_call.1} parent=39 // pred_check
          %p408 = pneg %p176
        $region86: #{tpu_custom_call.1} parent=39 // pred_check_branch
          %410 = sbr.rel (%p408) target = $region88
        $region87: #{tpu_custom_call.1} parent=39 // pred_region
          %s412 = ssub.s32 128, 128
          %413 = vsyncadd %s404, %s412
          %s414 = sadd.s32 %s31, %s32
          %s415 = smul.addr %s414, 128
          %s416 = scalar_lea.hbm %s7, %s415
          %s418 = sshll.u32 %s407, 4
          %s419 = int_to_ptr.vmem [resolvable:$true] %s418
          %421 = dma.vmem_to_hbm [thread:$0]  %s419, 128, %s416, %s404
        $region88: #{tpu_custom_call.1} parent=39 // pred_fallthru
          _
      $region40: #{tpu_custom_call.1} parent=5 // pred_fallthru
        _
      %p422 = scmp.le.s32.totalorder 2, %s22
      // Predicated region
      $region89: #{tpu_custom_call.1} parent=5 // pred_check
        %p423 = pneg %p422
      $region90: #{tpu_custom_call.1} parent=5 // pred_check_branch
        %425 = sbr.rel (%p423) target = $region92
      $region91: #{tpu_custom_call.1} parent=5 // pred_region
        %s426 = ssub.s32 %s22, 2
        // Predicated region
        $region93: #{tpu_custom_call.1} parent=91 // pred_check
          %p427 = pneg %p182
        $region94: #{tpu_custom_call.1} parent=91 // pred_check_branch
          %429 = sbr.rel (%p427) target = $region96
        $region95: #{tpu_custom_call.1} parent=91 // pred_region
          %s430 = sand.u32 %s167, 1
          %s431 = scalar_lea.sflag [#allocation7], %s430
          %s432 = sand.u32 %s167, 1
          %s433 = smul.addr %s432, 8
          %s434 = scalar_lea.vmem [#allocation6], %s433
          %435 = dma.done %s431, 128
        $region96: #{tpu_custom_call.1} parent=91 // pred_fallthru
          _
      $region92: #{tpu_custom_call.1} parent=5 // pred_fallthru
        _
    $region6: #{tpu_custom_call.1} parent=1 // loop_footer
      %s26 = sadd.s32 1, %s22
    $region7: #{tpu_custom_call.1} parent=1 // loop_footer_branch
      %21 = sbr.rel target = $region3
    $region8: #{tpu_custom_call.1} parent=1 // loop_exit
      _
    %436 = vsyncpa [#allocation7], 1
    %s437 = scalar_lea.sflag [#allocation7], 1
    %438 = vsyncpa %s437, 1
  %439 = vsyncmov [#allocation3]
  %s440 = vpop.sfrf %439
  %p441 = scmp.eq.s32.totalorder %s440, 0
  %p442 = pneg %p441
  %444 = shalt.err (%p442)

</llo_original>
